<compile_context>
chip_gen: v5e
topology: v5e:2x2
jax: 0.10.0
libtpu: 0.0.40
codegen_flags: <defaults>
</compile_context>

<pallas_src>
import jax
import jax.numpy as jnp
from jax.experimental import pallas as pl
from jax.experimental.pallas import tpu as pltpu


def _round_up(n, m):
    return ((n + m - 1) // m) * m


def _ffn_kernel(x_ref, w1_ref, b1_ref, w2_ref, b2_ref, o_ref):
    # x_ref:  (tm, Hp) f32 tile of rows
    # w1_ref: (Hp, Hp) bf16 conv1 weight (pre-transposed: y = x @ w1)
    # b1_ref: (1, Hp)  f32
    # w2_ref: (Hp, Hp) bf16
    # b2_ref: (1, Hp)  f32
    x = x_ref[...]                                  # f32 (kept for exact residual)
    xb = x.astype(jnp.bfloat16)                     # bf16 operands for the MXU
    h = jnp.dot(xb, w1_ref[...], preferred_element_type=jnp.float32) + b1_ref[...]
    h = jnp.maximum(h, 0.0)                         # ReLU in f32 (VPU)
    y = jnp.dot(h.astype(jnp.bfloat16), w2_ref[...],
                preferred_element_type=jnp.float32) + b2_ref[...]
    # residual add (dropout1/dropout2 are identity at inference)
    o_ref[...] = (y + x).astype(o_ref.dtype)


def pointwise_feedforward(x, w1, b1, w2, b2, *, tm=512, lane=128):
    """x: (B, L, H); w1, w2: (H, H, 1) Conv1d(k=1) weights; b1, b2: (H,)."""
    B, L, H = x.shape
    rows = B * L
    orig_dtype = x.dtype

    # Lane-dense hidden dim: pad H up to a multiple of 128.
    Hp = _round_up(H, lane)

    # Row tile: large for MXU/pipeline efficiency, but never larger than the
    # (8-aligned) row count, and clamped so double-buffered tiles + resident
    # bf16 weights stay inside the default scoped-VMEM budget (~32 MiB).
    tm = max(8, min(tm, _round_up(rows, 8)))

    def _vmem_bytes(t):
        io_tiles = 2 * 2 * t * Hp * 4            # x + out, f32, double-buffered
        weights = 2 * 2 * Hp * Hp * 2            # two bf16 weights, double-buffered
        biases = 2 * 2 * Hp * 4
        return io_tiles + weights + biases

    while tm > 8 and _vmem_bytes(tm) > 24 * 1024 * 1024:
        tm //= 2
    rows_p = _round_up(rows, tm)

    # Wrapper-side padding (zeros) for ragged rows / non-128 hidden dims.
    x2d = x.reshape(rows, H).astype(jnp.float32)
    if rows_p != rows or Hp != H:
        x2d = jnp.pad(x2d, ((0, rows_p - rows), (0, Hp - H)))

    # Conv1d(k=1): out[c_out] = sum_in w[c_out, c_in] * x[c_in] + b[c_out]
    # -> y = x @ W^T + b, so pre-transpose (and zero-pad) the squeezed weights.
    w1t = jnp.squeeze(w1, -1).T                  # (H_in, H_out)
    w2t = jnp.squeeze(w2, -1).T
    if Hp != H:
        w1t = jnp.pad(w1t, ((0, Hp - H), (0, Hp - H)))
        w2t = jnp.pad(w2t, ((0, Hp - H), (0, Hp - H)))
        b1 = jnp.pad(b1, (0, Hp - H))
        b2 = jnp.pad(b2, (0, Hp - H))
    w1b = w1t.astype(jnp.bfloat16)               # cast once, outside the kernel
    w2b = w2t.astype(jnp.bfloat16)
    b1r = b1.reshape(1, Hp).astype(jnp.float32)
    b2r = b2.reshape(1, Hp).astype(jnp.float32)

    # Advisory cost hint for XLA scheduling around the custom call.
    cost = pl.CostEstimate(
        flops=2 * 2 * rows_p * Hp * Hp,
        transcendentals=0,
        bytes_accessed=rows_p * Hp * 4 * 2 + 2 * Hp * Hp * 2 + 2 * Hp * 4,
    )

    cp_kwargs = dict(dimension_semantics=("parallel",))
    est = _vmem_bytes(tm)
    if est > 30 * 1024 * 1024:
        # Very large H: weights alone exceed the scoped default; raise the cap.
        # TODO(synk): for H where bf16 weights alone exceed ~32 MiB (v7x), tile
        # the weight K/N dims with an accumulator instead of keeping them resident.
        cp_kwargs["vmem_limit_bytes"] = min(est + (4 << 20), 100 << 20)

    out = pl.pallas_call(
        _ffn_kernel,
        out_shape=jax.ShapeDtypeStruct((rows_p, Hp), jnp.float32),
        grid_spec=pltpu.PrefetchScalarGridSpec(
            num_scalar_prefetch=0,
            grid=(rows_p // tm,),
            in_specs=[
                pl.BlockSpec((tm, Hp), lambda i: (i, 0)),    # x rows (streamed)
                pl.BlockSpec((Hp, Hp), lambda i: (0, 0)),    # w1^T (resident, bf16)
                pl.BlockSpec((1, Hp), lambda i: (0, 0)),     # b1
                pl.BlockSpec((Hp, Hp), lambda i: (0, 0)),    # w2^T (resident, bf16)
                pl.BlockSpec((1, Hp), lambda i: (0, 0)),     # b2
            ],
            out_specs=pl.BlockSpec((tm, Hp), lambda i: (i, 0)),
        ),
        compiler_params=pltpu.CompilerParams(**cp_kwargs),
        cost_estimate=cost,
    )(x2d, w1b, b1r, w2b, b2r)

    return out[:rows, :H].reshape(B, L, H).astype(orig_dtype)


def _reference(x, w1, b1, w2, b2):
    # Pure-JAX f32 reference matching the PyTorch forward (eval mode).
    w1m = jnp.squeeze(w1, -1)  # (H_out, H_in)
    w2m = jnp.squeeze(w2, -1)
    h = jnp.einsum("blh,oh->blo", x, w1m) + b1
    h = jnp.maximum(h, 0.0)
    y = jnp.einsum("blh,oh->blo", h, w2m) + b2
    return y + x


if __name__ == "__main__":
    B, L, H = 2, 8, 32  # batch, seq, hidden_units
    key = jax.random.PRNGKey(0)
    kx, k1, k2, k3, k4 = jax.random.split(key, 5)

    x = jax.random.normal(kx, (B, L, H), dtype=jnp.float32)
    # Conv1d(hidden, hidden, kernel_size=1) parameter shapes: (H, H, 1) and (H,)
    bound = 1.0 / (H ** 0.5)
    w1 = jax.random.uniform(k1, (H, H, 1), jnp.float32, -bound, bound)
    b1 = jax.random.uniform(k2, (H,), jnp.float32, -bound, bound)
    w2 = jax.random.uniform(k3, (H, H, 1), jnp.float32, -bound, bound)
    b2 = jax.random.uniform(k4, (H,), jnp.float32, -bound, bound)

    out = pointwise_feedforward(x, w1, b1, w2, b2)
    out = jax.block_until_ready(out)

    ref = _reference(x, w1, b1, w2, b2)
    assert out.shape == (B, L, H)
    # bf16 MXU operands -> loosened tolerance vs the f32 reference.
    assert jnp.allclose(out, ref, atol=3e-2, rtol=3e-2), "mismatch vs reference"

    # TODO(synk): dropout1/dropout2 are identity here (inference); training-mode
    # dropout would use pltpu.prng_seed + pltpu.stateful_bernoulli.
    print("KERNEL_OK")
</pallas_src>

<mosaic_0001>
module attributes {stable_mosaic.version = 11 : i64} {
  func.func @_ffn_kernel(%arg0: i32, %arg1: memref<16x128xf32, #tpu.memory_space<vmem>>, %arg2: memref<128x128xbf16, #tpu.memory_space<vmem>>, %arg3: memref<1x128xf32, #tpu.memory_space<vmem>>, %arg4: memref<128x128xbf16, #tpu.memory_space<vmem>>, %arg5: memref<1x128xf32, #tpu.memory_space<vmem>>, %arg6: memref<16x128xf32, #tpu.memory_space<vmem>>) attributes {dimension_semantics = [#tpu.dimension_semantics<parallel>], iteration_bounds = array<i64: 1>, scalar_prefetch = 0 : i64, scratch_operands = 0 : i64, tpu.core_type = #tpu.core_type<tc>, window_params = [{transform_indices = @transform_0, window_bounds = array<i64: 16, 128>}, {pipeline_mode = #tpu.pipeline_mode<synchronous>, transform_indices = @transform_1, window_bounds = array<i64: 128, 128>}, {pipeline_mode = #tpu.pipeline_mode<synchronous>, transform_indices = @transform_2, window_bounds = array<i64: 1, 128>}, {pipeline_mode = #tpu.pipeline_mode<synchronous>, transform_indices = @transform_3, window_bounds = array<i64: 128, 128>}, {pipeline_mode = #tpu.pipeline_mode<synchronous>, transform_indices = @transform_4, window_bounds = array<i64: 1, 128>}, {transform_indices = @transform_5, window_bounds = array<i64: 16, 128>}]} {
    %c0 = arith.constant 0 : index
    %c0_0 = arith.constant 0 : index
    %0 = vector.load %arg1[%c0, %c0_0] : memref<16x128xf32, #tpu.memory_space<vmem>>, vector<16x128xf32>
    %1 = arith.truncf %0 : vector<16x128xf32> to vector<16x128xbf16>
    %c0_1 = arith.constant 0 : index
    %c0_2 = arith.constant 0 : index
    %2 = vector.load %arg2[%c0_1, %c0_2] : memref<128x128xbf16, #tpu.memory_space<vmem>>, vector<128x128xbf16>
    %cst = arith.constant dense<0.000000e+00> : vector<16x128xf32>
    %3 = tpu.matmul %1, %2, %cst {dimension_numbers = #tpu.dot_dimension_numbers<[1], [0], [0], [1], [0, 0, 1, 1], [], []>} : vector<16x128xbf16>, vector<128x128xbf16>, vector<16x128xf32> -> vector<16x128xf32>
    %c0_3 = arith.constant 0 : index
    %c0_4 = arith.constant 0 : index
    %4 = vector.load %arg3[%c0_3, %c0_4] : memref<1x128xf32, #tpu.memory_space<vmem>>, vector<1x128xf32>
    %5 = vector.broadcast %4 : vector<1x128xf32> to vector<16x128xf32>
    %6 = arith.addf %3, %5 : vector<16x128xf32>
    %cst_5 = arith.constant 0.000000e+00 : f32
    %7 = vector.broadcast %cst_5 : f32 to vector<16x128xf32>
    %8 = arith.maximumf %6, %7 : vector<16x128xf32>
    %9 = arith.truncf %8 : vector<16x128xf32> to vector<16x128xbf16>
    %c0_6 = arith.constant 0 : index
    %c0_7 = arith.constant 0 : index
    %10 = vector.load %arg4[%c0_6, %c0_7] : memref<128x128xbf16, #tpu.memory_space<vmem>>, vector<128x128xbf16>
    %cst_8 = arith.constant dense<0.000000e+00> : vector<16x128xf32>
    %11 = tpu.matmul %9, %10, %cst_8 {dimension_numbers = #tpu.dot_dimension_numbers<[1], [0], [0], [1], [0, 0, 1, 1], [], []>} : vector<16x128xbf16>, vector<128x128xbf16>, vector<16x128xf32> -> vector<16x128xf32>
    %c0_9 = arith.constant 0 : index
    %c0_10 = arith.constant 0 : index
    %12 = vector.load %arg5[%c0_9, %c0_10] : memref<1x128xf32, #tpu.memory_space<vmem>>, vector<1x128xf32>
    %13 = vector.broadcast %12 : vector<1x128xf32> to vector<16x128xf32>
    %14 = arith.addf %11, %13 : vector<16x128xf32>
    %15 = arith.addf %14, %0 : vector<16x128xf32>
    %c0_11 = arith.constant 0 : index
    %c0_12 = arith.constant 0 : index
    %16 = vector.load %arg6[%c0_11, %c0_12] : memref<16x128xf32, #tpu.memory_space<vmem>>, vector<16x128xf32>
    tpu.vector_store %arg6[%c0_11, %c0_12], %15 {strides = array<i32>} : memref<16x128xf32, #tpu.memory_space<vmem>>, vector<16x128xf32>,
    return
  }
  func.func @transform_0(%arg0: i32) -> (i32, i32) {
    %c0_i32 = arith.constant 0 : i32
    %c0_i32_0 = arith.constant 0 : i32
    return %arg0, %c0_i32 : i32, i32
  }
  func.func @transform_1(%arg0: i32) -> (i32, i32) {
    %c0_i32 = arith.constant 0 : i32
    %c0_i32_0 = arith.constant 0 : i32
    %c0_i32_1 = arith.constant 0 : i32
    return %c0_i32, %c0_i32_0 : i32, i32
  }
  func.func @transform_2(%arg0: i32) -> (i32, i32) {
    %c0_i32 = arith.constant 0 : i32
    %c0_i32_0 = arith.constant 0 : i32
    %c0_i32_1 = arith.constant 0 : i32
    return %c0_i32, %c0_i32_0 : i32, i32
  }
  func.func @transform_3(%arg0: i32) -> (i32, i32) {
    %c0_i32 = arith.constant 0 : i32
    %c0_i32_0 = arith.constant 0 : i32
    %c0_i32_1 = arith.constant 0 : i32
    return %c0_i32, %c0_i32_0 : i32, i32
  }
  func.func @transform_4(%arg0: i32) -> (i32, i32) {
    %c0_i32 = arith.constant 0 : i32
    %c0_i32_0 = arith.constant 0 : i32
    %c0_i32_1 = arith.constant 0 : i32
    return %c0_i32, %c0_i32_0 : i32, i32
  }
  func.func @transform_5(%arg0: i32) -> (i32, i32) {
    %c0_i32 = arith.constant 0 : i32
    %c0_i32_0 = arith.constant 0 : i32
    return %arg0, %c0_i32 : i32, i32
  }
}

</mosaic_0001>

<llo_original>
// kernel: tpu_custom_call.1
$region0: #{tpu_custom_call.1}
  #allocation0 [shape = 'u32[]', space=smem, size = 0x4, offset = 0x4, fixed_abs, tag = 'smem constant byte address 0x4 - core index']
  #allocation1 [shape = 'u32[72,128]{1,0:T(1,128)}', space=vmem, size = 0x9000, scoped, tag = 'internal scratch']
  %s0 = inlined_call_operand.hbm [shape: f32[16,128], index: 0, kind: input, shape index: {}]
  %s1 = inlined_call_operand.hbm [shape: bf16[128,128], index: 1, kind: input, shape index: {}]
  %s2 = inlined_call_operand.vmem [shape: f32[1,128], index: 2, kind: input, shape index: {}]
  %s3 = inlined_call_operand.hbm [shape: bf16[128,128], index: 3, kind: input, shape index: {}]
  %s4 = inlined_call_operand.vmem [shape: f32[1,128], index: 4, kind: input, shape index: {}]
  %s5 = inlined_call_operand.hbm [shape: f32[16,128], index: 5, kind: output, shape index: {}]
  %s6 = sld [smem:[#allocation0]]
  $region42: #{tpu_custom_call.1} parent=0
    _
  %s8 = ssub.s32 1, %s6
  %s9 = scalar_select 0, %s8, %s6
  $region1: #{tpu_custom_call.1} parent=0
    #allocation2 [shape = 'u8[8192]{0}', space=vmem, size = 0x2000, scoped, tag = 'input window, operand 0, single buffered']
    #allocation3 [shape = 's32[1]{0}', space=sflag, size = 0x4, scoped, tag = 'scoped memory for tpu_custom_call.1']
    #allocation4 [shape = 's32[1]{0}', space=sflag, size = 0x4, scoped, tag = 'scoped memory for tpu_custom_call.1']
    #allocation5 [shape = 'u8[32768]{0}', space=vmem, size = 0x8000, scoped, tag = 'input window, operand 1, single buffered']
    #allocation6 [shape = 's32[1]{0}', space=sflag, size = 0x4, scoped, tag = 'scoped memory for tpu_custom_call.1']
    #allocation7 [shape = 'u8[32768]{0}', space=vmem, size = 0x8000, scoped, tag = 'input window, operand 3, single buffered']
    #allocation8 [shape = 'u8[8192]{0}', space=vmem, size = 0x2000, scoped, tag = 'output window, operand 0, single buffered']
    %10 = vsyncpa [#allocation3], 0
    %11 = vsyncpa [#allocation6], 0
    %12 = vsyncpa [#allocation4], 0
    // Predicated region
    $region2: #{tpu_custom_call.1} parent=1 // pred_check
      _
    $region3: #{tpu_custom_call.1} parent=1 // pred_check_branch
      %14 = sbr.rel (0) target = $region5
    $region4: #{tpu_custom_call.1} parent=1 // pred_region
      %16 = vsyncadd [#allocation3], 0
      %s17 = sshll.u32 %s0, 4
      %s18 = int_to_ptr.hbm [resolvable:$true] %s17
      %s19 = sshll.u32 [#allocation2], 4
      %s20 = int_to_ptr.vmem [resolvable:$true] %s19
      %25 = dma.hbm_to_vmem [thread:$0]  %s18, 256, %s20, [#allocation3], 128, 128, 8
    $region5: #{tpu_custom_call.1} parent=1 // pred_fallthru
      _
    // Predicated region
    $region6: #{tpu_custom_call.1} parent=1 // pred_check
      _
    $region7: #{tpu_custom_call.1} parent=1 // pred_check_branch
      %27 = sbr.rel (0) target = $region9
    $region8: #{tpu_custom_call.1} parent=1 // pred_region
      %29 = vsyncadd [#allocation6], 0
      %s30 = sshll.u32 %s1, 4
      %s31 = int_to_ptr.hbm [resolvable:$true] %s30
      %s32 = sshll.u32 [#allocation5], 4
      %s33 = int_to_ptr.vmem [resolvable:$true] %s32
      %38 = dma.hbm_to_vmem [thread:$0]  %s31, 1024, %s33, [#allocation6], 64, 64, 4
    $region9: #{tpu_custom_call.1} parent=1 // pred_fallthru
      _
    // Predicated region
    $region10: #{tpu_custom_call.1} parent=1 // pred_check
      _
    $region11: #{tpu_custom_call.1} parent=1 // pred_check_branch
      %40 = sbr.rel (0) target = $region13
    $region12: #{tpu_custom_call.1} parent=1 // pred_region
      _
    $region13: #{tpu_custom_call.1} parent=1 // pred_fallthru
      _
    // Predicated region
    $region14: #{tpu_custom_call.1} parent=1 // pred_check
      _
    $region15: #{tpu_custom_call.1} parent=1 // pred_check_branch
      %42 = sbr.rel (0) target = $region17
    $region16: #{tpu_custom_call.1} parent=1 // pred_region
      %44 = vsyncadd [#allocation6], 0
      %s45 = sshll.u32 %s3, 4
      %s46 = int_to_ptr.hbm [resolvable:$true] %s45
      %s47 = sshll.u32 [#allocation7], 4
      %s48 = int_to_ptr.vmem [resolvable:$true] %s47
      %53 = dma.hbm_to_vmem [thread:$0]  %s46, 1024, %s48, [#allocation6], 64, 64, 4
    $region17: #{tpu_custom_call.1} parent=1 // pred_fallthru
      _
    // Predicated region
    $region18: #{tpu_custom_call.1} parent=1 // pred_check
      _
    $region19: #{tpu_custom_call.1} parent=1 // pred_check_branch
      %55 = sbr.rel (0) target = $region21
    $region20: #{tpu_custom_call.1} parent=1 // pred_region
      _
    $region21: #{tpu_custom_call.1} parent=1 // pred_fallthru
      _
    // Predicated region
    $region22: #{tpu_custom_call.1} parent=1 // pred_check
      _
    $region23: #{tpu_custom_call.1} parent=1 // pred_check_branch
      %57 = sbr.rel (0) target = $region25
    $region24: #{tpu_custom_call.1} parent=1 // pred_region
      %59 = dma.done [#allocation3], 256
    $region25: #{tpu_custom_call.1} parent=1 // pred_fallthru
      _
    // Predicated region
    $region26: #{tpu_custom_call.1} parent=1 // pred_check
      _
    $region27: #{tpu_custom_call.1} parent=1 // pred_check_branch
      %61 = sbr.rel (0) target = $region29
    $region28: #{tpu_custom_call.1} parent=1 // pred_region
      %63 = dma.done [#allocation6], 1024
    $region29: #{tpu_custom_call.1} parent=1 // pred_fallthru
      _
    // Predicated region
    $region30: #{tpu_custom_call.1} parent=1 // pred_check
      _
    $region31: #{tpu_custom_call.1} parent=1 // pred_check_branch
      %65 = sbr.rel (0) target = $region33
    $region32: #{tpu_custom_call.1} parent=1 // pred_region
      %67 = dma.done [#allocation6], 1024
    $region33: #{tpu_custom_call.1} parent=1 // pred_fallthru
      _
    %v68 = vld [vmem:[#allocation2] sm:$0xff]
    %v69 = vld [vmem:[#allocation2 + $0x8] sm:$0xff]
    %v70 = vpack.c.bf16 %v69, %v68
    %v71 = vld [vmem:[#allocation5] sm:$0xf]
    %v72 = vld [vmem:[#allocation5 + $0x4] sm:$0xf]
    %v73 = vld [vmem:[#allocation5 + $0x8] sm:$0xf]
    %v74 = vld [vmem:[#allocation5 + $0xc] sm:$0xf]
    %v75 = vld [vmem:[#allocation5 + $0x10] sm:$0xf]
    %v76 = vld [vmem:[#allocation5 + $0x14] sm:$0xf]
    %v77 = vld [vmem:[#allocation5 + $0x18] sm:$0xf]
    %v78 = vld [vmem:[#allocation5 + $0x1c] sm:$0xf]
    %v79 = vld [vmem:[#allocation5 + $0x20] sm:$0xf]
    %v80 = vld [vmem:[#allocation5 + $0x24] sm:$0xf]
    %v81 = vld [vmem:[#allocation5 + $0x28] sm:$0xf]
    %v82 = vld [vmem:[#allocation5 + $0x2c] sm:$0xf]
    %v83 = vld [vmem:[#allocation5 + $0x30] sm:$0xf]
    %v84 = vld [vmem:[#allocation5 + $0x34] sm:$0xf]
    %v85 = vld [vmem:[#allocation5 + $0x38] sm:$0xf]
    %v86 = vld [vmem:[#allocation5 + $0x3c] sm:$0xf]
    %v87 = vld [vmem:[%s2] sm:$0x1]
    %v89 = vperm.slane %v87, 0
    %v107 = vunpack.c.l.b16 %v71
    %v108 = vunpack.c.l.b16 %v72
    %v109 = vunpack.c.l.b16 %v73
    %v110 = vunpack.c.l.b16 %v74
    %v111 = vunpack.c.l.b16 %v75
    %v112 = vunpack.c.l.b16 %v76
    %v113 = vunpack.c.l.b16 %v77
    %v114 = vunpack.c.l.b16 %v78
    %v115 = vunpack.c.l.b16 %v79
    %v116 = vunpack.c.l.b16 %v80
    %v117 = vunpack.c.l.b16 %v81
    %v118 = vunpack.c.l.b16 %v82
    %v119 = vunpack.c.l.b16 %v83
    %v120 = vunpack.c.l.b16 %v84
    %v121 = vunpack.c.l.b16 %v85
    %v122 = vunpack.c.l.b16 %v86
    %v123 = vpack.c.b16 %v108, %v107
    %v124 = vpack.c.b16 %v110, %v109
    %v125 = vpack.c.b16 %v112, %v111
    %v126 = vpack.c.b16 %v114, %v113
    %v127 = vpack.c.b16 %v116, %v115
    %v128 = vpack.c.b16 %v118, %v117
    %v129 = vpack.c.b16 %v120, %v119
    %v130 = vpack.c.b16 %v122, %v121
    %139 = vmatpush.bf16.msra.mxu0 %v130
    %140 = vmatpush.bf16.msra.mxu0 %v129
    %141 = vmatpush.bf16.msra.mxu0 %v128
    %142 = vmatpush.bf16.msra.mxu0 %v127
    %143 = vmatpush.bf16.msra.mxu0 %v126
    %144 = vmatpush.bf16.msra.mxu0 %v125
    %145 = vmatpush.bf16.msra.mxu0 %v124
    %146 = vmatpush.bf16.msra.mxu0 %v123
    %147 = vmatmul.bf16.gmra.mxu0 %v70
    %v148 = vpop.f32.mrf.mxu0
    %v149 = vadd.f32 %v89, %v148
    %v150 = vpop.f32.mrf.mxu0
    %v151 = vadd.f32 %v89, %v150
    %152 = vdwg.mxu0
    %v153 = vmax.f32 %v149, 0.0
    %v154 = vmax.f32 %v151, 0.0
    %v155 = vpack.c.bf16 %v154, %v153
    %v156 = vld [vmem:[#allocation7] sm:$0xf]
    %v157 = vld [vmem:[#allocation7 + $0x4] sm:$0xf]
    %v158 = vld [vmem:[#allocation7 + $0x8] sm:$0xf]
    %v159 = vld [vmem:[#allocation7 + $0xc] sm:$0xf]
    %v160 = vld [vmem:[#allocation7 + $0x10] sm:$0xf]
    %v161 = vld [vmem:[#allocation7 + $0x14] sm:$0xf]
    %v162 = vld [vmem:[#allocation7 + $0x18] sm:$0xf]
    %v163 = vld [vmem:[#allocation7 + $0x1c] sm:$0xf]
    %v164 = vld [vmem:[#allocation7 + $0x20] sm:$0xf]
    %v165 = vld [vmem:[#allocation7 + $0x24] sm:$0xf]
    %v166 = vld [vmem:[#allocation7 + $0x28] sm:$0xf]
    %v167 = vld [vmem:[#allocation7 + $0x2c] sm:$0xf]
    %v168 = vld [vmem:[#allocation7 + $0x30] sm:$0xf]
    %v169 = vld [vmem:[#allocation7 + $0x34] sm:$0xf]
    %v170 = vld [vmem:[#allocation7 + $0x38] sm:$0xf]
    %v171 = vld [vmem:[#allocation7 + $0x3c] sm:$0xf]
    %v172 = vld [vmem:[%s4] sm:$0x1]
    %v174 = vperm.slane %v172, 0
    %v192 = vunpack.c.l.b16 %v156
    %v193 = vunpack.c.l.b16 %v157
    %v194 = vunpack.c.l.b16 %v158
    %v195 = vunpack.c.l.b16 %v159
    %v196 = vunpack.c.l.b16 %v160
    %v197 = vunpack.c.l.b16 %v161
    %v198 = vunpack.c.l.b16 %v162
    %v199 = vunpack.c.l.b16 %v163
    %v200 = vunpack.c.l.b16 %v164
    %v201 = vunpack.c.l.b16 %v165
    %v202 = vunpack.c.l.b16 %v166
    %v203 = vunpack.c.l.b16 %v167
    %v204 = vunpack.c.l.b16 %v168
    %v205 = vunpack.c.l.b16 %v169
    %v206 = vunpack.c.l.b16 %v170
    %v207 = vunpack.c.l.b16 %v171
    %v208 = vpack.c.b16 %v193, %v192
    %v209 = vpack.c.b16 %v195, %v194
    %v210 = vpack.c.b16 %v197, %v196
    %v211 = vpack.c.b16 %v199, %v198
    %v212 = vpack.c.b16 %v201, %v200
    %v213 = vpack.c.b16 %v203, %v202
    %v214 = vpack.c.b16 %v205, %v204
    %v215 = vpack.c.b16 %v207, %v206
    %224 = vmatpush.bf16.msra.mxu0 %v215
    %225 = vmatpush.bf16.msra.mxu0 %v214
    %226 = vmatpush.bf16.msra.mxu0 %v213
    %227 = vmatpush.bf16.msra.mxu0 %v212
    %228 = vmatpush.bf16.msra.mxu0 %v211
    %229 = vmatpush.bf16.msra.mxu0 %v210
    %230 = vmatpush.bf16.msra.mxu0 %v209
    %231 = vmatpush.bf16.msra.mxu0 %v208
    %232 = vmatmul.bf16.gmra.mxu0 %v155
    %v233 = vpop.f32.mrf.mxu0
    %v234 = vadd.f32 %v174, %v233
    %v235 = vpop.f32.mrf.mxu0
    %v236 = vadd.f32 %v174, %v235
    %237 = vdwg.mxu0
    %v238 = vadd.f32 %v234, %v68
    %v239 = vadd.f32 %v236, %v69
    %240 = vst [vmem:[#allocation8] sm:$0xff] %v238
    %241 = vst [vmem:[#allocation8 + $0x8] sm:$0xff] %v239
    // Predicated region
    $region34: #{tpu_custom_call.1} parent=1 // pred_check
      _
    $region35: #{tpu_custom_call.1} parent=1 // pred_check_branch
      %243 = sbr.rel (0) target = $region37
    $region36: #{tpu_custom_call.1} parent=1 // pred_region
      %245 = vsyncadd [#allocation4], 0
      %s246 = sshll.u32 [#allocation8], 4
      %s247 = int_to_ptr.vmem [resolvable:$true] %s246
      %s248 = sshll.u32 %s5, 4
      %s249 = int_to_ptr.hbm [resolvable:$true] %s248
      %254 = dma.vmem_to_hbm [thread:$0]  %s247, 256, %s249, [#allocation4], 128, 128, 8
    $region37: #{tpu_custom_call.1} parent=1 // pred_fallthru
      _
    // Predicated region
    $region38: #{tpu_custom_call.1} parent=1 // pred_check
      _
    $region39: #{tpu_custom_call.1} parent=1 // pred_check_branch
      %256 = sbr.rel (0) target = $region41
    $region40: #{tpu_custom_call.1} parent=1 // pred_region
      %258 = dma.done [#allocation4], 256
    $region41: #{tpu_custom_call.1} parent=1 // pred_fallthru
      _
    %259 = vsyncpa [#allocation3], 1
    %260 = vsyncpa [#allocation6], 1
    %261 = vsyncpa [#allocation4], 1

</llo_original>
